<compile_context>
chip_gen: v6e
topology: v6e:2x2x1
jax: 0.10.0
libtpu: 0.0.40
codegen_flags: <defaults>
</compile_context>

<pallas_src>
import math
from typing import Any, NamedTuple, Optional

import jax
import jax.numpy as jnp
from jax.experimental import pallas as pl
from jax.experimental.pallas import tpu as pltpu


def _round_up(x: int, m: int) -> int:
    return (x + m - 1) // m * m


def _pick_batch_tile(Bp: int, max_tile: int = 256) -> int:
    """Largest multiple-of-8 divisor of Bp, capped so the batch grid has at
    least 2 steps (megacore split on v7x) and at most `max_tile` rows
    (256 fills the v6e/v7x 256x256 MXU; also fine on v5e)."""
    if Bp <= 8:
        return Bp
    cap = min(max_tile, Bp // 2)
    best = 8
    d = 16
    while d <= cap:
        if Bp % d == 0:
            best = d
        d += 8
    return best


# ----------------------------------------------------------------------------
# Kernels
# ----------------------------------------------------------------------------
def _lstm_resident_kernel(x_ref, h_ref, c_ref, wx_ref, wh_ref, b_ref,
                          h_out_ref, c_out_ref):
    """One LSTM step on one batch tile; weights fully resident in VMEM.

    x_ref  : [TB, I]        (matmul dtype, unpadded lanes)
    h_ref  : [TB, H]        (matmul dtype, unpadded lanes)
    c_ref  : [TB, Hp]       f32, gate-padded
    wx_ref : [I, 4*Hp]      packed, gate-padded i2h weights
    wh_ref : [H, 4*Hp]      packed, gate-padded h2h weights
    b_ref  : [1, 4*Hp]      folded bias (f32)
    """
    Hp = c_ref.shape[-1]

    preact = jnp.dot(x_ref[...], wx_ref[...],
                     preferred_element_type=jnp.float32)
    preact = preact + jnp.dot(h_ref[...], wh_ref[...],
                              preferred_element_type=jnp.float32)
    preact = preact + b_ref[...]

    # One wide sigmoid over the contiguous i|f|o slab, lane-aligned slices.
    sig = jax.nn.sigmoid(preact[:, : 3 * Hp])
    i_t = sig[:, 0 * Hp:1 * Hp]
    f_t = sig[:, 1 * Hp:2 * Hp]
    o_t = sig[:, 2 * Hp:3 * Hp]
    g_t = jnp.tanh(preact[:, 3 * Hp:])

    c_t = c_ref[...].astype(jnp.float32) * f_t + i_t * g_t
    h_t = o_t * jnp.tanh(c_t)

    c_out_ref[...] = c_t.astype(c_out_ref.dtype)
    h_out_ref[...] = h_t.astype(h_out_ref.dtype)


def _lstm_ktiled_kernel(xh_ref, c_ref, w_ref, b_ref, h_out_ref, c_out_ref,
                        acc_ref):
    """K-tiled variant for very large I+H: accumulate the preactivation over
    the contraction grid axis into an f32 VMEM scratch, finalize at k==last."""
    k = pl.program_id(1)

    @pl.when(k == 0)
    def _():
        acc_ref[...] = jnp.zeros_like(acc_ref)

    acc_ref[...] += jnp.dot(xh_ref[...], w_ref[...],
                            preferred_element_type=jnp.float32)

    @pl.when(k == pl.num_programs(1) - 1)
    def _():
        Hp = c_ref.shape[-1]
        preact = acc_ref[...] + b_ref[...]        # bias added exactly once
        sig = jax.nn.sigmoid(preact[:, : 3 * Hp])
        i_t = sig[:, 0 * Hp:1 * Hp]
        f_t = sig[:, 1 * Hp:2 * Hp]
        o_t = sig[:, 2 * Hp:3 * Hp]
        g_t = jnp.tanh(preact[:, 3 * Hp:])
        c_t = c_ref[...].astype(jnp.float32) * f_t + i_t * g_t
        h_t = o_t * jnp.tanh(c_t)
        c_out_ref[...] = c_t.astype(c_out_ref.dtype)
        h_out_ref[...] = h_t.astype(h_out_ref.dtype)


# ----------------------------------------------------------------------------
# One-time parameter packing (all weight-side work hoisted out of the call)
# ----------------------------------------------------------------------------
class PackedLSTMParams(NamedTuple):
    wx: jax.Array                 # [I, 4*Hp]   packed i2h weights
    wh: jax.Array                 # [H, 4*Hp]   packed h2h weights
    w_cat: Optional[jax.Array]    # [Kp, 4*Hp]  fused weights (K-tiled path only)
    b: jax.Array                  # [1, 4*Hp]   folded bias (f32)
    inp_size: int
    hidden: int
    Hp: int
    Kp: Optional[int]
    k_tile: Optional[int]
    matmul_dtype: Any


def pack_lstm_params(w_i2h, b_i2h, w_h2h, b_h2h, *,
                     matmul_dtype=jnp.bfloat16,
                     k_tile: Optional[int] = None,
                     resident_weight_limit_bytes: int = 24 * 1024 * 1024):
    """Pack PyTorch-layout parameters once.

    w_i2h: [4H, I], b_i2h: [4H], w_h2h: [4H, H], b_h2h: [4H].
    Gates are padded to Hp = round_up(H, 128) so every gate slice / output
    store in the kernel is lane-dense. If the resident weight footprint would
    exceed `resident_weight_limit_bytes` (or k_tile is given), a fused
    K-tiled layout is also prepared.
    """
    fourH, I = w_i2h.shape
    H = fourH // 4
    assert w_h2h.shape == (4 * H, H)
    Hp = _round_up(H, 128)
    itemsize = jnp.dtype(matmul_dtype).itemsize

    def _gate_pack(w):  # [4H, K] -> [K, 4*Hp], gate-major, Hp-padded columns
        K = w.shape[1]
        wt = jnp.transpose(w.reshape(4, H, K), (2, 0, 1))   # [K, 4, H]
        wt = jnp.pad(wt, ((0, 0), (0, 0), (0, Hp - H)))
        return wt.reshape(K, 4 * Hp).astype(matmul_dtype)

    wx = _gate_pack(w_i2h)                                    # [I, 4*Hp]
    wh = _gate_pack(w_h2h)                                    # [H, 4*Hp]

    bias = (b_i2h + b_h2h).reshape(4, H)
    bias = jnp.pad(bias, ((0, 0), (0, Hp - H)))
    bias = bias.reshape(1, 4 * Hp).astype(jnp.float32)

    w_bytes = (I + H) * 4 * Hp * itemsize
    if k_tile is None and w_bytes > resident_weight_limit_bytes:
        k_tile = 512                                          # auto fallback

    w_cat = None
    Kp = None
    if k_tile is not None:
        k_tile = _round_up(k_tile, 128)                       # lane-aligned K tiles
        Kp = _round_up(I + H, k_tile)
        w_cat = jnp.concatenate([wx, wh], axis=0)             # [I+H, 4*Hp]
        w_cat = jnp.pad(w_cat, ((0, Kp - (I + H)), (0, 0)))

    return PackedLSTMParams(wx=wx, wh=wh, w_cat=w_cat, b=bias, inp_size=I,
                            hidden=H, Hp=Hp, Kp=Kp, k_tile=k_tile,
                            matmul_dtype=matmul_dtype)


# ----------------------------------------------------------------------------
# Wrappers
# ----------------------------------------------------------------------------
def _lstm_cell_resident(params, x, h, c, max_batch_tile):
    I, H, Hp = params.inp_size, params.hidden, params.Hp
    B = x.shape[0]
    h_dtype, c_dtype = x.dtype, c.dtype

    Bp = _round_up(B, 8)
    TB = _pick_batch_tile(Bp, max_batch_tile)
    pad_b = Bp - B

    # No lane padding for x/h (full-extent last dims); c is gate-padded to Hp
    # (a no-op whenever H is a multiple of 128).
    x_p = jnp.pad(x.astype(params.matmul_dtype), ((0, pad_b), (0, 0)))
    h_p = jnp.pad(h.astype(params.matmul_dtype), ((0, pad_b), (0, 0)))
    c_p = jnp.pad(c.astype(jnp.float32), ((0, pad_b), (0, Hp - H)))

    grid = (Bp // TB,)

    itemsize = jnp.dtype(params.matmul_dtype).itemsize
    est = ((I + H) * 4 * Hp * itemsize + 4 * Hp * 4           # resident weights + bias
           + 2 * TB * (I + H) * itemsize + 2 * TB * Hp * 4    # x/h/c tiles (dbl-buffered)
           + 2 * TB * Hp * (jnp.dtype(h_dtype).itemsize + jnp.dtype(c_dtype).itemsize)
           + 6 * TB * 4 * Hp * 4                              # preact / gate temporaries
           + (8 << 20))
    vmem_limit = int(min(max(est, 32 << 20), 64 << 20))

    in_specs = [
        pl.BlockSpec((TB, I), lambda i: (i, 0)),
        pl.BlockSpec((TB, H), lambda i: (i, 0)),
        pl.BlockSpec((TB, Hp), lambda i: (i, 0)),
        # Resident blocks (constant index_map): single-buffer to halve VMEM.
        pl.BlockSpec((I, 4 * Hp), lambda i: (0, 0), pipeline_mode=pl.Buffered(1)),
        pl.BlockSpec((H, 4 * Hp), lambda i: (0, 0), pipeline_mode=pl.Buffered(1)),
        pl.BlockSpec((1, 4 * Hp), lambda i: (0, 0), pipeline_mode=pl.Buffered(1)),
    ]
    out_specs = [
        pl.BlockSpec((TB, Hp), lambda i: (i, 0)),
        pl.BlockSpec((TB, Hp), lambda i: (i, 0)),
    ]
    out_shapes = (
        jax.ShapeDtypeStruct((Bp, Hp), h_dtype),
        jax.ShapeDtypeStruct((Bp, Hp), c_dtype),
    )

    h_pad, c_pad = pl.pallas_call(
        _lstm_resident_kernel,
        out_shape=out_shapes,
        grid_spec=pltpu.PrefetchScalarGridSpec(
            num_scalar_prefetch=0,
            grid=grid,
            in_specs=in_specs,
            out_specs=out_specs,
        ),
        compiler_params=pltpu.CompilerParams(
            dimension_semantics=("parallel",),
            vmem_limit_bytes=vmem_limit,
        ),
    )(x_p, h_p, c_p, params.wx, params.wh, params.b)

    return h_pad[:B, :H], c_pad[:B, :H]


def _lstm_cell_ktiled(params, x, h, c, max_batch_tile):
    I, H, Hp, Kp, tk = (params.inp_size, params.hidden, params.Hp,
                        params.Kp, params.k_tile)
    B = x.shape[0]
    h_dtype, c_dtype = x.dtype, c.dtype

    Bp = _round_up(B, 8)
    TB = _pick_batch_tile(Bp, max_batch_tile)
    pad_b = Bp - B

    xh = jnp.concatenate([x.astype(params.matmul_dtype),
                          h.astype(params.matmul_dtype)], axis=1)
    xh = jnp.pad(xh, ((0, pad_b), (0, Kp - (I + H))))
    c_p = jnp.pad(c.astype(jnp.float32), ((0, pad_b), (0, Hp - H)))

    grid = (Bp // TB, Kp // tk)

    itemsize = jnp.dtype(params.matmul_dtype).itemsize
    est = (2 * TB * tk * itemsize + 2 * tk * 4 * Hp * itemsize + 4 * Hp * 4
           + 2 * TB * Hp * 4
           + 2 * TB * Hp * (jnp.dtype(h_dtype).itemsize + jnp.dtype(c_dtype).itemsize)
           + TB * 4 * Hp * 4                                  # f32 accumulator scratch
           + 6 * TB * 4 * Hp * 4
           + (8 << 20))
    vmem_limit = int(min(max(est, 32 << 20), 64 << 20))

    in_specs = [
        pl.BlockSpec((TB, tk), lambda i, k: (i, k)),
        pl.BlockSpec((TB, Hp), lambda i, k: (i, 0)),
        pl.BlockSpec((tk, 4 * Hp), lambda i, k: (k, 0)),
        pl.BlockSpec((1, 4 * Hp), lambda i, k: (0, 0), pipeline_mode=pl.Buffered(1)),
    ]
    out_specs = [
        pl.BlockSpec((TB, Hp), lambda i, k: (i, 0)),
        pl.BlockSpec((TB, Hp), lambda i, k: (i, 0)),
    ]
    out_shapes = (
        jax.ShapeDtypeStruct((Bp, Hp), h_dtype),
        jax.ShapeDtypeStruct((Bp, Hp), c_dtype),
    )

    h_pad, c_pad = pl.pallas_call(
        _lstm_ktiled_kernel,
        out_shape=out_shapes,
        grid_spec=pltpu.PrefetchScalarGridSpec(
            num_scalar_prefetch=0,
            grid=grid,
            in_specs=in_specs,
            out_specs=out_specs,
            scratch_shapes=[pltpu.VMEM((TB, 4 * Hp), jnp.float32)],
        ),
        compiler_params=pltpu.CompilerParams(
            dimension_semantics=("parallel", "arbitrary"),
            vmem_limit_bytes=vmem_limit,
        ),
    )(xh, c_p, params.w_cat, params.b)

    return h_pad[:B, :H], c_pad[:B, :H]


def lstm_cell(params: PackedLSTMParams, x, h, c, *, max_batch_tile=256):
    """One LSTM step. Returns (h_t, (h_t, c_t)) like the PyTorch module."""
    if params.k_tile is not None:
        h_t, c_t = _lstm_cell_ktiled(params, x, h, c, max_batch_tile)
    else:
        h_t, c_t = _lstm_cell_resident(params, x, h, c, max_batch_tile)
    return h_t, (h_t, c_t)


# ----------------------------------------------------------------------------
# Pure-JAX reference (matches the PyTorch forward exactly)
# ----------------------------------------------------------------------------
def _reference_lstm(x, h, c, w_i2h, b_i2h, w_h2h, b_h2h):
    H = h.shape[-1]
    hi = jax.lax.Precision.HIGHEST
    preact = (jnp.dot(x, w_i2h.T, precision=hi) + b_i2h
              + jnp.dot(h, w_h2h.T, precision=hi) + b_h2h)
    gates = jax.nn.sigmoid(preact[:, :3 * H])
    g_t = jnp.tanh(preact[:, 3 * H:])
    i_t = gates[:, :H]
    f_t = gates[:, H:2 * H]
    o_t = gates[:, -H:]
    c_t = c * f_t + i_t * g_t
    h_t = o_t * jnp.tanh(c_t)
    return h_t, c_t


if __name__ == "__main__":
    keys = jax.random.split(jax.random.PRNGKey(0), 14)

    # ---- Tests 1 & 2: small shapes, resident-weight path (f32 and bf16). ----
    B, INP, HID = 4, 16, 32
    stdv = 1.0 / math.sqrt(HID)
    w_i2h = jax.random.uniform(keys[0], (4 * HID, INP), jnp.float32, -stdv, stdv)
    b_i2h = jax.random.uniform(keys[1], (4 * HID,), jnp.float32, -stdv, stdv)
    w_h2h = jax.random.uniform(keys[2], (4 * HID, HID), jnp.float32, -stdv, stdv)
    b_h2h = jax.random.uniform(keys[3], (4 * HID,), jnp.float32, -stdv, stdv)
    x = jax.random.normal(keys[4], (B, INP), jnp.float32)
    h0 = jax.random.normal(keys[5], (B, HID), jnp.float32)
    c0 = jax.random.normal(keys[6], (B, HID), jnp.float32)

    h_ref, c_ref = _reference_lstm(x, h0, c0, w_i2h, b_i2h, w_h2h, b_h2h)

    # f32 weights, resident path (tolerance covers default MXU f32 precision).
    p32 = pack_lstm_params(w_i2h, b_i2h, w_h2h, b_h2h, matmul_dtype=jnp.float32)
    h_t, (_, c_t) = lstm_cell(p32, x, h0, c0)
    jax.block_until_ready((h_t, c_t))
    assert jnp.allclose(h_t, h_ref, atol=5e-3, rtol=5e-3), "h mismatch (f32 resident)"
    assert jnp.allclose(c_t, c_ref, atol=5e-3, rtol=5e-3), "c mismatch (f32 resident)"

    # bf16 weights / bf16 x,h path (default), f32 accumulation + f32 cell state.
    pbf = pack_lstm_params(w_i2h, b_i2h, w_h2h, b_h2h)
    h_b, (_, c_b) = lstm_cell(pbf, x, h0, c0)
    jax.block_until_ready((h_b, c_b))
    assert jnp.allclose(h_b, h_ref, atol=5e-2, rtol=5e-2), "h mismatch (bf16 resident)"
    assert jnp.allclose(c_b, c_ref, atol=5e-2, rtol=5e-2), "c mismatch (bf16 resident)"

    # ---- Test 3: K-tiled accumulator path, forced small k_tile (4 K steps). --
    B2, I2, H2 = 16, 200, 256
    stdv2 = 1.0 / math.sqrt(H2)
    w2_i2h = jax.random.uniform(keys[7], (4 * H2, I2), jnp.float32, -stdv2, stdv2)
    b2_i2h = jax.random.uniform(keys[8], (4 * H2,), jnp.float32, -stdv2, stdv2)
    w2_h2h = jax.random.uniform(keys[9], (4 * H2, H2), jnp.float32, -stdv2, stdv2)
    b2_h2h = jax.random.uniform(keys[10], (4 * H2,), jnp.float32, -stdv2, stdv2)
    x2 = jax.random.normal(keys[11], (B2, I2), jnp.float32)
    h2 = jax.random.normal(keys[12], (B2, H2), jnp.float32)
    c2 = jax.random.normal(keys[13], (B2, H2), jnp.float32)

    h2_ref, c2_ref = _reference_lstm(x2, h2, c2, w2_i2h, b2_i2h, w2_h2h, b2_h2h)
    pkt = pack_lstm_params(w2_i2h, b2_i2h, w2_h2h, b2_h2h,
                           matmul_dtype=jnp.float32, k_tile=128)
    h2_t, (_, c2_t) = lstm_cell(pkt, x2, h2, c2)
    jax.block_until_ready((h2_t, c2_t))
    assert jnp.allclose(h2_t, h2_ref, atol=5e-3, rtol=5e-3), "h mismatch (k-tiled)"
    assert jnp.allclose(c2_t, c2_ref, atol=5e-3, rtol=5e-3), "c mismatch (k-tiled)"

    print("KERNEL_OK")
</pallas_src>

<mosaic_0001>
module attributes {stable_mosaic.version = 11 : i64} {
  func.func @_lstm_resident_kernel(%arg0: i32, %arg1: memref<8x16xf32, #tpu.memory_space<vmem>>, %arg2: memref<8x32xf32, #tpu.memory_space<vmem>>, %arg3: memref<8x128xf32, #tpu.memory_space<vmem>>, %arg4: memref<16x512xf32, #tpu.memory_space<vmem>>, %arg5: memref<32x512xf32, #tpu.memory_space<vmem>>, %arg6: memref<1x512xf32, #tpu.memory_space<vmem>>, %arg7: memref<8x128xf32, #tpu.memory_space<vmem>>, %arg8: memref<8x128xf32, #tpu.memory_space<vmem>>) attributes {dimension_semantics = [#tpu.dimension_semantics<parallel>], iteration_bounds = array<i64: 1>, scalar_prefetch = 0 : i64, scratch_operands = 0 : i64, tpu.core_type = #tpu.core_type<tc>, window_params = [{transform_indices = @transform_0, window_bounds = array<i64: 8, 16>}, {transform_indices = @transform_1, window_bounds = array<i64: 8, 32>}, {transform_indices = @transform_2, window_bounds = array<i64: 8, 128>}, {pipeline_mode = #tpu.pipeline_mode<synchronous>, transform_indices = @transform_3, window_bounds = array<i64: 16, 512>}, {pipeline_mode = #tpu.pipeline_mode<synchronous>, transform_indices = @transform_4, window_bounds = array<i64: 32, 512>}, {pipeline_mode = #tpu.pipeline_mode<synchronous>, transform_indices = @transform_5, window_bounds = array<i64: 1, 512>}, {transform_indices = @transform_6, window_bounds = array<i64: 8, 128>}, {transform_indices = @transform_7, window_bounds = array<i64: 8, 128>}]} {
    %c0 = arith.constant 0 : index
    %c0_0 = arith.constant 0 : index
    %0 = vector.load %arg1[%c0, %c0_0] : memref<8x16xf32, #tpu.memory_space<vmem>>, vector<8x16xf32>
    %c0_1 = arith.constant 0 : index
    %c0_2 = arith.constant 0 : index
    %1 = vector.load %arg4[%c0_1, %c0_2] : memref<16x512xf32, #tpu.memory_space<vmem>>, vector<16x512xf32>
    %cst = arith.constant dense<0.000000e+00> : vector<8x512xf32>
    %2 = tpu.matmul %0, %1, %cst {dimension_numbers = #tpu.dot_dimension_numbers<[1], [0], [0], [1], [0, 0, 1, 1], [], []>} : vector<8x16xf32>, vector<16x512xf32>, vector<8x512xf32> -> vector<8x512xf32>
    %c0_3 = arith.constant 0 : index
    %c0_4 = arith.constant 0 : index
    %3 = vector.load %arg2[%c0_3, %c0_4] : memref<8x32xf32, #tpu.memory_space<vmem>>, vector<8x32xf32>
    %c0_5 = arith.constant 0 : index
    %c0_6 = arith.constant 0 : index
    %4 = vector.load %arg5[%c0_5, %c0_6] : memref<32x512xf32, #tpu.memory_space<vmem>>, vector<32x512xf32>
    %cst_7 = arith.constant dense<0.000000e+00> : vector<8x512xf32>
    %5 = tpu.matmul %3, %4, %cst_7 {dimension_numbers = #tpu.dot_dimension_numbers<[1], [0], [0], [1], [0, 0, 1, 1], [], []>} : vector<8x32xf32>, vector<32x512xf32>, vector<8x512xf32> -> vector<8x512xf32>
    %6 = arith.addf %2, %5 : vector<8x512xf32>
    %c0_8 = arith.constant 0 : index
    %c0_9 = arith.constant 0 : index
    %7 = vector.load %arg6[%c0_8, %c0_9] : memref<1x512xf32, #tpu.memory_space<vmem>>, vector<1x512xf32>
    %8 = vector.broadcast %7 : vector<1x512xf32> to vector<8x512xf32>
    %9 = arith.addf %6, %8 : vector<8x512xf32>
    %10 = vector.extract_strided_slice %9 {offsets = [0, 0], sizes = [8, 384], strides = [1, 1]} : vector<8x512xf32> to vector<8x384xf32>
    %11 = arith.negf %10 : vector<8x384xf32>
    %12 = math.exp %11 : vector<8x384xf32>
    %cst_10 = arith.constant 1.000000e+00 : f32
    %13 = vector.broadcast %cst_10 : f32 to vector<8x384xf32>
    %14 = arith.addf %13, %12 : vector<8x384xf32>
    %15 = arith.divf %13, %14 : vector<8x384xf32>
    %16 = vector.extract_strided_slice %15 {offsets = [0, 0], sizes = [8, 128], strides = [1, 1]} : vector<8x384xf32> to vector<8x128xf32>
    %17 = vector.extract_strided_slice %15 {offsets = [0, 128], sizes = [8, 128], strides = [1, 1]} : vector<8x384xf32> to vector<8x128xf32>
    %18 = vector.extract_strided_slice %15 {offsets = [0, 256], sizes = [8, 128], strides = [1, 1]} : vector<8x384xf32> to vector<8x128xf32>
    %19 = vector.extract_strided_slice %9 {offsets = [0, 384], sizes = [8, 128], strides = [1, 1]} : vector<8x512xf32> to vector<8x128xf32>
    %20 = math.tanh %19 : vector<8x128xf32>
    %c0_11 = arith.constant 0 : index
    %c0_12 = arith.constant 0 : index
    %21 = vector.load %arg3[%c0_11, %c0_12] : memref<8x128xf32, #tpu.memory_space<vmem>>, vector<8x128xf32>
    %22 = arith.mulf %21, %17 : vector<8x128xf32>
    %23 = arith.mulf %16, %20 : vector<8x128xf32>
    %24 = arith.addf %22, %23 : vector<8x128xf32>
    %25 = math.tanh %24 : vector<8x128xf32>
    %26 = arith.mulf %18, %25 : vector<8x128xf32>
    %c0_13 = arith.constant 0 : index
    %c0_14 = arith.constant 0 : index
    %27 = vector.load %arg8[%c0_13, %c0_14] : memref<8x128xf32, #tpu.memory_space<vmem>>, vector<8x128xf32>
    tpu.vector_store %arg8[%c0_13, %c0_14], %24 {strides = array<i32>} : memref<8x128xf32, #tpu.memory_space<vmem>>, vector<8x128xf32>,
    %c0_15 = arith.constant 0 : index
    %c0_16 = arith.constant 0 : index
    %28 = vector.load %arg7[%c0_15, %c0_16] : memref<8x128xf32, #tpu.memory_space<vmem>>, vector<8x128xf32>
    tpu.vector_store %arg7[%c0_15, %c0_16], %26 {strides = array<i32>} : memref<8x128xf32, #tpu.memory_space<vmem>>, vector<8x128xf32>,
    return
  }
  func.func @transform_0(%arg0: i32) -> (i32, i32) {
    %c0_i32 = arith.constant 0 : i32
    %c0_i32_0 = arith.constant 0 : i32
    return %arg0, %c0_i32 : i32, i32
  }
  func.func @transform_1(%arg0: i32) -> (i32, i32) {
    %c0_i32 = arith.constant 0 : i32
    %c0_i32_0 = arith.constant 0 : i32
    return %arg0, %c0_i32 : i32, i32
  }
  func.func @transform_2(%arg0: i32) -> (i32, i32) {
    %c0_i32 = arith.constant 0 : i32
    %c0_i32_0 = arith.constant 0 : i32
    return %arg0, %c0_i32 : i32, i32
  }
  func.func @transform_3(%arg0: i32) -> (i32, i32) {
    %c0_i32 = arith.constant 0 : i32
    %c0_i32_0 = arith.constant 0 : i32
    %c0_i32_1 = arith.constant 0 : i32
    return %c0_i32, %c0_i32_0 : i32, i32
  }
  func.func @transform_4(%arg0: i32) -> (i32, i32) {
    %c0_i32 = arith.constant 0 : i32
    %c0_i32_0 = arith.constant 0 : i32
    %c0_i32_1 = arith.constant 0 : i32
    return %c0_i32, %c0_i32_0 : i32, i32
  }
  func.func @transform_5(%arg0: i32) -> (i32, i32) {
    %c0_i32 = arith.constant 0 : i32
    %c0_i32_0 = arith.constant 0 : i32
    %c0_i32_1 = arith.constant 0 : i32
    return %c0_i32, %c0_i32_0 : i32, i32
  }
  func.func @transform_6(%arg0: i32) -> (i32, i32) {
    %c0_i32 = arith.constant 0 : i32
    %c0_i32_0 = arith.constant 0 : i32
    return %arg0, %c0_i32 : i32, i32
  }
  func.func @transform_7(%arg0: i32) -> (i32, i32) {
    %c0_i32 = arith.constant 0 : i32
    %c0_i32_0 = arith.constant 0 : i32
    return %arg0, %c0_i32 : i32, i32
  }
}

</mosaic_0001>

<llo_original>
// kernel: tpu_custom_call.1
$region0: #{tpu_custom_call.1}
  #allocation0 [shape = 'u32[]', space=smem, size = 0x4, offset = 0x4, fixed_abs, tag = 'smem constant byte address 0x4 - core index']
  #allocation1 [shape = 'u32[144,128]{1,0:T(1,128)}', space=vmem, size = 0x12000, scoped, tag = 'internal scratch']
  %s0 = inlined_call_operand.hbm [shape: f32[8,16], index: 0, kind: input, shape index: {}]
  %s1 = inlined_call_operand.hbm [shape: f32[8,32], index: 1, kind: input, shape index: {}]
  %s2 = inlined_call_operand.hbm [shape: f32[8,128], index: 2, kind: input, shape index: {}]
  %s3 = inlined_call_operand.hbm [shape: f32[16,512], index: 3, kind: input, shape index: {}]
  %s4 = inlined_call_operand.hbm [shape: f32[32,512], index: 4, kind: input, shape index: {}]
  %s5 = inlined_call_operand.vmem [shape: f32[1,512], index: 5, kind: input, shape index: {}]
  %s6 = inlined_call_operand.hbm [shape: f32[8,128], index: 6, kind: output, shape index: {0}]
  %s7 = inlined_call_operand.hbm [shape: f32[8,128], index: 7, kind: output, shape index: {1}]
  %8 = xla_tuple %s6, %s7
  %s9 = sld [smem:[#allocation0]]
  $region62: #{tpu_custom_call.1} parent=0
    _
  %s11 = ssub.s32 1, %s9
  %s12 = scalar_select 0, %s11, %s9
  $region1: #{tpu_custom_call.1} parent=0
    #allocation2 [shape = 'u8[4096]{0}', space=vmem, size = 0x1000, scoped, tag = 'input window, operand 0, single buffered']
    #allocation3 [shape = 's32[1]{0}', space=sflag, size = 0x4, scoped, tag = 'scoped memory for tpu_custom_call.1']
    #allocation4 [shape = 's32[1]{0}', space=sflag, size = 0x4, scoped, tag = 'scoped memory for tpu_custom_call.1']
    #allocation5 [shape = 'u8[4096]{0}', space=vmem, size = 0x1000, scoped, tag = 'input window, operand 1, single buffered']
    #allocation6 [shape = 's32[1]{0}', space=sflag, size = 0x4, scoped, tag = 'scoped memory for tpu_custom_call.1']
    #allocation7 [shape = 'u8[4096]{0}', space=vmem, size = 0x1000, scoped, tag = 'input window, operand 2, single buffered']
    #allocation8 [shape = 'u8[32768]{0}', space=vmem, size = 0x8000, scoped, tag = 'input window, operand 3, single buffered']
    #allocation9 [shape = 's32[1]{0}', space=sflag, size = 0x4, scoped, tag = 'scoped memory for tpu_custom_call.1']
    #allocation10 [shape = 'u8[65536]{0}', space=vmem, size = 0x10000, scoped, tag = 'input window, operand 4, single buffered']
    #allocation11 [shape = 'u8[4096]{0}', space=vmem, size = 0x1000, scoped, tag = 'output window, operand 0, single buffered']
    #allocation12 [shape = 'u8[4096]{0}', space=vmem, size = 0x1000, scoped, tag = 'output window, operand 1, single buffered']
    #allocation13 [shape = 's32[1]{0}', space=sflag, size = 0x4, scoped, tag = 'scoped memory for tpu_custom_call.1']
    %13 = vsyncpa [#allocation3], 0
    %14 = vsyncpa [#allocation6], 0
    %15 = vsyncpa [#allocation9], 0
    %16 = vsyncpa [#allocation4], 0
    %17 = vsyncpa [#allocation13], 0
    // Predicated region
    $region2: #{tpu_custom_call.1} parent=1 // pred_check
      _
    $region3: #{tpu_custom_call.1} parent=1 // pred_check_branch
      %19 = sbr.rel (0) target = $region5
    $region4: #{tpu_custom_call.1} parent=1 // pred_region
      %s21 = ssub.s32 128, 128
      %22 = vsyncadd [#allocation3], %s21
      %s24 = sshll.u32 [#allocation2], 4
      %s25 = int_to_ptr.vmem [resolvable:$true] %s24
      %27 = dma.hbm_to_vmem [thread:$0]  %s0, 128, %s25, [#allocation3]
    $region5: #{tpu_custom_call.1} parent=1 // pred_fallthru
      _
    // Predicated region
    $region6: #{tpu_custom_call.1} parent=1 // pred_check
      _
    $region7: #{tpu_custom_call.1} parent=1 // pred_check_branch
      %29 = sbr.rel (0) target = $region9
    $region8: #{tpu_custom_call.1} parent=1 // pred_region
      %s31 = ssub.s32 128, 128
      %32 = vsyncadd [#allocation6], %s31
      %s34 = sshll.u32 [#allocation5], 4
      %s35 = int_to_ptr.vmem [resolvable:$true] %s34
      %37 = dma.hbm_to_vmem [thread:$0]  %s1, 128, %s35, [#allocation6]
    $region9: #{tpu_custom_call.1} parent=1 // pred_fallthru
      _
    // Predicated region
    $region10: #{tpu_custom_call.1} parent=1 // pred_check
      _
    $region11: #{tpu_custom_call.1} parent=1 // pred_check_branch
      %39 = sbr.rel (0) target = $region13
    $region12: #{tpu_custom_call.1} parent=1 // pred_region
      %s41 = ssub.s32 128, 128
      %42 = vsyncadd [#allocation6], %s41
      %s44 = sshll.u32 [#allocation7], 4
      %s45 = int_to_ptr.vmem [resolvable:$true] %s44
      %47 = dma.hbm_to_vmem [thread:$0]  %s2, 128, %s45, [#allocation6]
    $region13: #{tpu_custom_call.1} parent=1 // pred_fallthru
      _
    // Predicated region
    $region14: #{tpu_custom_call.1} parent=1 // pred_check
      _
    $region15: #{tpu_custom_call.1} parent=1 // pred_check_branch
      %49 = sbr.rel (0) target = $region17
    $region16: #{tpu_custom_call.1} parent=1 // pred_region
      %s51 = ssub.s32 1024, 1024
      %52 = vsyncadd [#allocation9], %s51
      %s53 = sshll.u32 [#allocation8], 4
      %s54 = int_to_ptr.vmem [resolvable:$true] %s53
      %59 = dma.hbm_to_vmem [thread:$0]  %s3, 1024, %s54, [#allocation9], 512, 512, 32
    $region17: #{tpu_custom_call.1} parent=1 // pred_fallthru
      _
    // Predicated region
    $region18: #{tpu_custom_call.1} parent=1 // pred_check
      _
    $region19: #{tpu_custom_call.1} parent=1 // pred_check_branch
      %61 = sbr.rel (0) target = $region21
    $region20: #{tpu_custom_call.1} parent=1 // pred_region
      %s63 = ssub.s32 2048, 2048
      %64 = vsyncadd [#allocation9], %s63
      %s65 = sshll.u32 [#allocation10], 4
      %s66 = int_to_ptr.vmem [resolvable:$true] %s65
      %71 = dma.hbm_to_vmem [thread:$0]  %s4, 2048, %s66, [#allocation9], 512, 512, 32
    $region21: #{tpu_custom_call.1} parent=1 // pred_fallthru
      _
    // Predicated region
    $region22: #{tpu_custom_call.1} parent=1 // pred_check
      _
    $region23: #{tpu_custom_call.1} parent=1 // pred_check_branch
      %73 = sbr.rel (0) target = $region25
    $region24: #{tpu_custom_call.1} parent=1 // pred_region
      _
    $region25: #{tpu_custom_call.1} parent=1 // pred_fallthru
      _
    // Predicated region
    $region26: #{tpu_custom_call.1} parent=1 // pred_check
      _
    $region27: #{tpu_custom_call.1} parent=1 // pred_check_branch
      %75 = sbr.rel (0) target = $region29
    $region28: #{tpu_custom_call.1} parent=1 // pred_region
      %76 = dma.done [#allocation3], 128
    $region29: #{tpu_custom_call.1} parent=1 // pred_fallthru
      _
    // Predicated region
    $region30: #{tpu_custom_call.1} parent=1 // pred_check
      _
    $region31: #{tpu_custom_call.1} parent=1 // pred_check_branch
      %78 = sbr.rel (0) target = $region33
    $region32: #{tpu_custom_call.1} parent=1 // pred_region
      %79 = dma.done [#allocation6], 128
    $region33: #{tpu_custom_call.1} parent=1 // pred_fallthru
      _
    // Predicated region
    $region34: #{tpu_custom_call.1} parent=1 // pred_check
      _
    $region35: #{tpu_custom_call.1} parent=1 // pred_check_branch
      %81 = sbr.rel (0) target = $region37
    $region36: #{tpu_custom_call.1} parent=1 // pred_region
      %82 = dma.done [#allocation6], 128
    $region37: #{tpu_custom_call.1} parent=1 // pred_fallthru
      _
    // Predicated region
    $region38: #{tpu_custom_call.1} parent=1 // pred_check
      _
    $region39: #{tpu_custom_call.1} parent=1 // pred_check_branch
      %84 = sbr.rel (0) target = $region41
    $region40: #{tpu_custom_call.1} parent=1 // pred_region
      %85 = dma.done [#allocation9], 1024
    $region41: #{tpu_custom_call.1} parent=1 // pred_fallthru
      _
    // Predicated region
    $region42: #{tpu_custom_call.1} parent=1 // pred_check
      _
    $region43: #{tpu_custom_call.1} parent=1 // pred_check_branch
      %87 = sbr.rel (0) target = $region45
    $region44: #{tpu_custom_call.1} parent=1 // pred_region
      %88 = dma.done [#allocation9], 2048
    $region45: #{tpu_custom_call.1} parent=1 // pred_fallthru
      _
    %v89 = vld [vmem:[#allocation2] sm:$0xff]
    %v90 = vld [vmem:[#allocation8] sm:$0xff]
    %v91 = vld [vmem:[#allocation8 + $0x8] sm:$0xff]
    %v92 = vld [vmem:[#allocation8 + $0x10] sm:$0xff]
    %v93 = vld [vmem:[#allocation8 + $0x18] sm:$0xff]
    %v94 = vld [vmem:[#allocation8 + $0x20] sm:$0xff]
    %v95 = vld [vmem:[#allocation8 + $0x28] sm:$0xff]
    %v96 = vld [vmem:[#allocation8 + $0x30] sm:$0xff]
    %v97 = vld [vmem:[#allocation8 + $0x38] sm:$0xff]
    %v98 = vld [vmem:[#allocation5] sm:$0xff]
    %v99 = vld [vmem:[#allocation10] sm:$0xff]
    %v100 = vld [vmem:[#allocation10 + $0x8] sm:$0xff]
    %v101 = vld [vmem:[#allocation10 + $0x10] sm:$0xff]
    %v102 = vld [vmem:[#allocation10 + $0x18] sm:$0xff]
    %v103 = vld [vmem:[#allocation10 + $0x20] sm:$0xff]
    %v104 = vld [vmem:[#allocation10 + $0x28] sm:$0xff]
    %v105 = vld [vmem:[#allocation10 + $0x30] sm:$0xff]
    %v106 = vld [vmem:[#allocation10 + $0x38] sm:$0xff]
    %v107 = vld [vmem:[#allocation10 + $0x40] sm:$0xff]
    %v108 = vld [vmem:[#allocation10 + $0x48] sm:$0xff]
    %v109 = vld [vmem:[#allocation10 + $0x50] sm:$0xff]
    %v110 = vld [vmem:[#allocation10 + $0x58] sm:$0xff]
    %v111 = vld [vmem:[#allocation10 + $0x60] sm:$0xff]
    %v112 = vld [vmem:[#allocation10 + $0x68] sm:$0xff]
    %v113 = vld [vmem:[#allocation10 + $0x70] sm:$0xff]
    %v114 = vld [vmem:[#allocation10 + $0x78] sm:$0xff]
    %vm115 = vcmask 261120
    %v117 = vsel %vm115, %v98, 0
    %119 = vmatprep.subr.mxu0 0.0
    %120 = vmatpush1.msra.mxu0 0.0
    %121 = vmatprep.subr.mxu0 0.0
    %122 = vmatpush1.msra.mxu0 0.0
    %123 = vmatprep.subr.mxu0 0.0
    %124 = vmatpush1.msra.mxu0 0.0
    %125 = vmatprep.subr.mxu0 0.0
    %126 = vmatpush1.msra.mxu0 0.0
    %127 = vmatprep.subr.mxu0 0.0
    %128 = vmatpush1.msra.mxu0 0.0
    %129 = vmatprep.subr.mxu0 0.0
    %130 = vmatpush1.msra.mxu0 0.0
    %131 = vmatprep.subr.mxu0 0.0
    %132 = vmatpush1.msra.mxu0 0.0
    %133 = vmatprep.subr.mxu0 0.0
    %134 = vmatpush1.msra.mxu0 0.0
    %135 = vmatprep.subr.mxu0 0.0
    %136 = vmatpush1.msra.mxu0 0.0
    %137 = vmatprep.subr.mxu0 0.0
    %138 = vmatpush1.msra.mxu0 0.0
    %139 = vmatprep.subr.mxu0 0.0
    %140 = vmatpush1.msra.mxu0 0.0
    %141 = vmatprep.subr.mxu0 0.0
    %142 = vmatpush1.msra.mxu0 0.0
    %143 = vmatprep.subr.mxu0 %v112
    %144 = vmatpush1.msra.mxu0 %v111
    %145 = vmatprep.subr.mxu0 %v108
    %146 = vmatpush1.msra.mxu0 %v107
    %147 = vmatprep.subr.mxu0 %v104
    %148 = vmatpush1.msra.mxu0 %v103
    %149 = vmatprep.subr.mxu0 %v100
    %150 = vmatpush1.msra.mxu0 %v99
    %151 = vmatprep.subr.mxu0 0.0
    %152 = vmatpush2.msra.mxu0 0.0
    %153 = vmatprep.subr.mxu0 0.0
    %154 = vmatpush2.msra.mxu0 0.0
    %155 = vmatprep.subr.mxu0 0.0
    %156 = vmatpush2.msra.mxu0 0.0
    %157 = vmatprep.subr.mxu0 0.0
    %158 = vmatpush2.msra.mxu0 0.0
    %159 = vmatprep.subr.mxu0 0.0
    %160 = vmatpush2.msra.mxu0 0.0
    %161 = vmatprep.subr.mxu0 0.0
    %162 = vmatpush2.msra.mxu0 0.0
    %163 = vmatprep.subr.mxu0 0.0
    %164 = vmatpush2.msra.mxu0 0.0
    %165 = vmatprep.subr.mxu0 0.0
    %166 = vmatpush2.msra.mxu0 0.0
    %167 = vmatprep.subr.mxu0 0.0
    %168 = vmatpush2.msra.mxu0 0.0
    %169 = vmatprep.subr.mxu0 0.0
    %170 = vmatpush2.msra.mxu0 0.0
    %171 = vmatprep.subr.mxu0 0.0
    %172 = vmatpush2.msra.mxu0 0.0
    %173 = vmatprep.subr.mxu0 0.0
    %174 = vmatpush2.msra.mxu0 0.0
    %175 = vmatprep.subr.mxu0 0.0
    %176 = vmatpush2.msra.mxu0 0.0
    %177 = vmatprep.subr.mxu0 0.0
    %178 = vmatpush2.msra.mxu0 0.0
    %179 = vmatprep.subr.mxu0 0.0
    %180 = vmatpush2.msra.mxu0 0.0
    %181 = vmatprep.subr.mxu0 0.0
    %182 = vmatpush2.msra.mxu0 0.0
    %183 = vmatprep.mubr.f32.mxu0 0.0
    %184 = vmatmul.mubr.f32.gmra.mxu0 %v117
    %v185 = vpop.f32.mrf.mxu0
    %v186 = vadd.f32 0.0, %v185
    %v187 = vpop.f32.mrf.mxu0
    %v188 = vadd.f32 0.0, %v187
    %189 = vdwg.mxu0
    %190 = vmatprep.subr.mxu0 0.0
    %191 = vmatpush1.msra.mxu0 0.0
    %192 = vmatprep.subr.mxu0 0.0
    %193 = vmatpush1.msra.mxu0 0.0
    %194 = vmatprep.subr.mxu0 0.0
    %195 = vmatpush1.msra.mxu0 0.0
    %196 = vmatprep.subr.mxu0 0.0
    %197 = vmatpush1.msra.mxu0 0.0
    %198 = vmatprep.subr.mxu0 0.0
    %199 = vmatpush1.msra.mxu0 0.0
    %200 = vmatprep.subr.mxu0 0.0
    %201 = vmatpush1.msra.mxu0 0.0
    %202 = vmatprep.subr.mxu0 0.0
    %203 = vmatpush1.msra.mxu0 0.0
    %204 = vmatprep.subr.mxu0 0.0
    %205 = vmatpush1.msra.mxu0 0.0
    %206 = vmatprep.subr.mxu0 0.0
    %207 = vmatpush1.msra.mxu0 0.0
    %208 = vmatprep.subr.mxu0 0.0
    %209 = vmatpush1.msra.mxu0 0.0
    %210 = vmatprep.subr.mxu0 0.0
    %211 = vmatpush1.msra.mxu0 0.0
    %212 = vmatprep.subr.mxu0 0.0
    %213 = vmatpush1.msra.mxu0 0.0
    %214 = vmatprep.subr.mxu0 %v114
    %215 = vmatpush1.msra.mxu0 %v113
    %216 = vmatprep.subr.mxu0 %v110
    %217 = vmatpush1.msra.mxu0 %v109
    %218 = vmatprep.subr.mxu0 %v106
    %219 = vmatpush1.msra.mxu0 %v105
    %220 = vmatprep.subr.mxu0 %v102
    %221 = vmatpush1.msra.mxu0 %v101
    %222 = vmatprep.subr.mxu0 0.0
    %223 = vmatpush2.msra.mxu0 0.0
    %224 = vmatprep.subr.mxu0 0.0
    %225 = vmatpush2.msra.mxu0 0.0
    %226 = vmatprep.subr.mxu0 0.0
    %227 = vmatpush2.msra.mxu0 0.0
    %228 = vmatprep.subr.mxu0 0.0
    %229 = vmatpush2.msra.mxu0 0.0
    %230 = vmatprep.subr.mxu0 0.0
    %231 = vmatpush2.msra.mxu0 0.0
    %232 = vmatprep.subr.mxu0 0.0
    %233 = vmatpush2.msra.mxu0 0.0
    %234 = vmatprep.subr.mxu0 0.0
    %235 = vmatpush2.msra.mxu0 0.0
    %236 = vmatprep.subr.mxu0 0.0
    %237 = vmatpush2.msra.mxu0 0.0
    %238 = vmatprep.subr.mxu0 0.0
    %239 = vmatpush2.msra.mxu0 0.0
    %240 = vmatprep.subr.mxu0 0.0
    %241 = vmatpush2.msra.mxu0 0.0
    %242 = vmatprep.subr.mxu0 0.0
    %243 = vmatpush2.msra.mxu0 0.0
    %244 = vmatprep.subr.mxu0 0.0
    %245 = vmatpush2.msra.mxu0 0.0
    %246 = vmatprep.subr.mxu0 0.0
    %247 = vmatpush2.msra.mxu0 0.0
    %248 = vmatprep.subr.mxu0 0.0
    %249 = vmatpush2.msra.mxu0 0.0
    %250 = vmatprep.subr.mxu0 0.0
    %251 = vmatpush2.msra.mxu0 0.0
    %252 = vmatprep.subr.mxu0 0.0
    %253 = vmatpush2.msra.mxu0 0.0
    %254 = vmatprep.mubr.f32.mxu0 0.0
    %255 = vmatmul.mubr.f32.gmra.mxu0 %v117
    %v256 = vpop.f32.mrf.mxu0
    %v257 = vadd.f32 0.0, %v256
    %v258 = vpop.f32.mrf.mxu0
    %v259 = vadd.f32 0.0, %v258
    %260 = vdwg.mxu0
    %vm261 = vcmask 130048
    %v263 = vsel %vm261, %v89, 0
    %265 = vmatprep.subr.mxu0 0.0
    %266 = vmatpush1.msra.mxu0 0.0
    %267 = vmatprep.subr.mxu0 0.0
    %268 = vmatpush1.msra.mxu0 0.0
    %269 = vmatprep.subr.mxu0 0.0
    %270 = vmatpush1.msra.mxu0 0.0
    %271 = vmatprep.subr.mxu0 0.0
    %272 = vmatpush1.msra.mxu0 0.0
    %273 = vmatprep.subr.mxu0 0.0
    %274 = vmatpush1.msra.mxu0 0.0
    %275 = vmatprep.subr.mxu0 0.0
    %276 = vmatpush1.msra.mxu0 0.0
    %277 = vmatprep.subr.mxu0 0.0
    %278 = vmatpush1.msra.mxu0 0.0
    %279 = vmatprep.subr.mxu0 0.0
    %280 = vmatpush1.msra.mxu0 0.0
    %281 = vmatprep.subr.mxu0 0.0
    %282 = vmatpush1.msra.mxu0 0.0
    %283 = vmatprep.subr.mxu0 0.0
    %284 = vmatpush1.msra.mxu0 0.0
    %285 = vmatprep.subr.mxu0 0.0
    %286 = vmatpush1.msra.mxu0 0.0
    %287 = vmatprep.subr.mxu0 0.0
    %288 = vmatpush1.msra.mxu0 0.0
    %289 = vmatprep.subr.mxu0 0.0
    %290 = vmatpush1.msra.mxu0 0.0
    %291 = vmatprep.subr.mxu0 0.0
    %292 = vmatpush1.msra.mxu0 0.0
    %293 = vmatprep.subr.mxu0 %v95
    %294 = vmatpush1.msra.mxu0 %v94
    %295 = vmatprep.subr.mxu0 %v91
    %296 = vmatpush1.msra.mxu0 %v90
    %297 = vmatprep.subr.mxu0 0.0
    %298 = vmatpush2.msra.mxu0 0.0
    %299 = vmatprep.subr.mxu0 0.0
    %300 = vmatpush2.msra.mxu0 0.0
    %301 = vmatprep.subr.mxu0 0.0
    %302 = vmatpush2.msra.mxu0 0.0
    %303 = vmatprep.subr.mxu0 0.0
    %304 = vmatpush2.msra.mxu0 0.0
    %305 = vmatprep.subr.mxu0 0.0
    %306 = vmatpush2.msra.mxu0 0.0
    %307 = vmatprep.subr.mxu0 0.0
    %308 = vmatpush2.msra.mxu0 0.0
    %309 = vmatprep.subr.mxu0 0.0
    %310 = vmatpush2.msra.mxu0 0.0
    %311 = vmatprep.subr.mxu0 0.0
    %312 = vmatpush2.msra.mxu0 0.0
    %313 = vmatprep.subr.mxu0 0.0
    %314 = vmatpush2.msra.mxu0 0.0
    %315 = vmatprep.subr.mxu0 0.0
    %316 = vmatpush2.msra.mxu0 0.0
    %317 = vmatprep.subr.mxu0 0.0
    %318 = vmatpush2.msra.mxu0 0.0
    %319 = vmatprep.subr.mxu0 0.0
    %320 = vmatpush2.msra.mxu0 0.0
    %321 = vmatprep.subr.mxu0 0.0
    %322 = vmatpush2.msra.mxu0 0.0
    %323 = vmatprep.subr.mxu0 0.0
    %324 = vmatpush2.msra.mxu0 0.0
    %325 = vmatprep.subr.mxu0 0.0
    %326 = vmatpush2.msra.mxu0 0.0
    %327 = vmatprep.subr.mxu0 0.0
    %328 = vmatpush2.msra.mxu0 0.0
    %329 = vmatprep.mubr.f32.mxu0 0.0
    %330 = vmatmul.mubr.f32.gmra.mxu0 %v263
    %v331 = vpop.f32.mrf.mxu0
    %v332 = vadd.f32 %v186, %v331
    %v333 = vpop.f32.mrf.mxu0
    %v334 = vadd.f32 %v188, %v333
    %335 = vdwg.mxu0
    %336 = vmatprep.subr.mxu0 0.0
    %337 = vmatpush1.msra.mxu0 0.0
    %338 = vmatprep.subr.mxu0 0.0
    %339 = vmatpush1.msra.mxu0 0.0
    %340 = vmatprep.subr.mxu0 0.0
    %341 = vmatpush1.msra.mxu0 0.0
    %342 = vmatprep.subr.mxu0 0.0
    %343 = vmatpush1.msra.mxu0 0.0
    %344 = vmatprep.subr.mxu0 0.0
    %345 = vmatpush1.msra.mxu0 0.0
    %346 = vmatprep.subr.mxu0 0.0
    %347 = vmatpush1.msra.mxu0 0.0
    %348 = vmatprep.subr.mxu0 0.0
    %349 = vmatpush1.msra.mxu0 0.0
    %350 = vmatprep.subr.mxu0 0.0
    %351 = vmatpush1.msra.mxu0 0.0
    %352 = vmatprep.subr.mxu0 0.0
    %353 = vmatpush1.msra.mxu0 0.0
    %354 = vmatprep.subr.mxu0 0.0
    %355 = vmatpush1.msra.mxu0 0.0
    %356 = vmatprep.subr.mxu0 0.0
    %357 = vmatpush1.msra.mxu0 0.0
    %358 = vmatprep.subr.mxu0 0.0
    %359 = vmatpush1.msra.mxu0 0.0
    %360 = vmatprep.subr.mxu0 0.0
    %361 = vmatpush1.msra.mxu0 0.0
    %362 = vmatprep.subr.mxu0 0.0
    %363 = vmatpush1.msra.mxu0 0.0
    %364 = vmatprep.subr.mxu0 %v97
    %365 = vmatpush1.msra.mxu0 %v96
    %366 = vmatprep.subr.mxu0 %v93
    %367 = vmatpush1.msra.mxu0 %v92
    %368 = vmatprep.subr.mxu0 0.0
    %369 = vmatpush2.msra.mxu0 0.0
    %370 = vmatprep.subr.mxu0 0.0
    %371 = vmatpush2.msra.mxu0 0.0
    %372 = vmatprep.subr.mxu0 0.0
    %373 = vmatpush2.msra.mxu0 0.0
    %374 = vmatprep.subr.mxu0 0.0
    %375 = vmatpush2.msra.mxu0 0.0
    %376 = vmatprep.subr.mxu0 0.0
    %377 = vmatpush2.msra.mxu0 0.0
    %378 = vmatprep.subr.mxu0 0.0
    %379 = vmatpush2.msra.mxu0 0.0
    %380 = vmatprep.subr.mxu0 0.0
    %381 = vmatpush2.msra.mxu0 0.0
    %382 = vmatprep.subr.mxu0 0.0
    %383 = vmatpush2.msra.mxu0 0.0
    %384 = vmatprep.subr.mxu0 0.0
    %385 = vmatpush2.msra.mxu0 0.0
    %386 = vmatprep.subr.mxu0 0.0
    %387 = vmatpush2.msra.mxu0 0.0
    %388 = vmatprep.subr.mxu0 0.0
    %389 = vmatpush2.msra.mxu0 0.0
    %390 = vmatprep.subr.mxu0 0.0
    %391 = vmatpush2.msra.mxu0 0.0
    %392 = vmatprep.subr.mxu0 0.0
    %393 = vmatpush2.msra.mxu0 0.0
    %394 = vmatprep.subr.mxu0 0.0
    %395 = vmatpush2.msra.mxu0 0.0
    %396 = vmatprep.subr.mxu0 0.0
    %397 = vmatpush2.msra.mxu0 0.0
    %398 = vmatprep.subr.mxu0 0.0
    %399 = vmatpush2.msra.mxu0 0.0
    %400 = vmatprep.mubr.f32.mxu0 0.0
    %401 = vmatmul.mubr.f32.gmra.mxu0 %v263
    %v402 = vpop.f32.mrf.mxu0
    %v403 = vadd.f32 %v257, %v402
    %v404 = vpop.f32.mrf.mxu0
    %v405 = vadd.f32 %v259, %v404
    %406 = vdwg.mxu0
    %v407 = vld [vmem:[%s5] sm:$0xf]
    %v409 = vlaneseq
    %v410 = vshrl.u32 %v409, 7
    %v411 = vsub.s32 0, %v410
    %v412 = vrot.slane %v407, %v411
    %v413 = vlaneseq
    %v414 = vshrl.u32 %v413, 7
    %v415 = vsub.s32 1, %v414
    %v416 = vrot.slane %v407, %v415
    %v417 = vlaneseq
    %v418 = vshrl.u32 %v417, 7
    %v419 = vsub.s32 2, %v418
    %v420 = vrot.slane %v407, %v419
    %v421 = vlaneseq
    %v422 = vshrl.u32 %v421, 7
    %v423 = vsub.s32 3, %v422
    %v424 = vrot.slane %v407, %v423
    %v429 = vadd.f32 %v332, %v412
    %v430 = vadd.f32 %v334, %v416
    %v431 = vadd.f32 %v403, %v420
    %v432 = vadd.f32 %v405, %v424
    %v433 = vxor.u32 %v429, 2147483648
    %v434 = vxor.u32 %v430, 2147483648
    %v435 = vxor.u32 %v431, 2147483648
    %v436 = vmul.f32 %v433, 1.442695
    %v437 = vpow.pop %v436
    %v438 = vmul.f32 %v434, 1.442695
    %v439 = vpow.pop %v438
    %v440 = vmul.f32 %v435, 1.442695
    %v441 = vpow.pop %v440
    %v442 = vadd.f32 %v437, 1.0
    %v443 = vadd.f32 %v439, 1.0
    %v444 = vadd.f32 %v441, 1.0
    %v445 = vrcp.pop %v442
    %v446 = vmul.f32 1.0, %v445
    %v447 = vrcp.pop %v443
    %v448 = vmul.f32 1.0, %v447
    %v449 = vrcp.pop %v444
    %v450 = vmul.f32 1.0, %v449
    %v451 = vtanh.pop %v432
    %v452 = vld [vmem:[#allocation7] sm:$0xff]
    %v453 = vmul.f32 %v452, %v448
    %v454 = vmul.f32 %v446, %v451
    %v455 = vadd.f32 %v453, %v454
    %v456 = vtanh.pop %v455
    %v457 = vmul.f32 %v450, %v456
    %458 = vst [vmem:[#allocation12] sm:$0xff] %v455
    %459 = vst [vmem:[#allocation11] sm:$0xff] %v457
    // Predicated region
    $region46: #{tpu_custom_call.1} parent=1 // pred_check
      _
    $region47: #{tpu_custom_call.1} parent=1 // pred_check_branch
      %461 = sbr.rel (0) target = $region49
    $region48: #{tpu_custom_call.1} parent=1 // pred_region
      %s463 = ssub.s32 128, 128
      %464 = vsyncadd [#allocation4], %s463
      %s466 = sshll.u32 [#allocation11], 4
      %s467 = int_to_ptr.vmem [resolvable:$true] %s466
      %469 = dma.vmem_to_hbm [thread:$0]  %s467, 128, %s6, [#allocation4]
    $region49: #{tpu_custom_call.1} parent=1 // pred_fallthru
      _
    // Predicated region
    $region50: #{tpu_custom_call.1} parent=1 // pred_check
      _
    $region51: #{tpu_custom_call.1} parent=1 // pred_check_branch
      %471 = sbr.rel (0) target = $region53
    $region52: #{tpu_custom_call.1} parent=1 // pred_region
      %s473 = ssub.s32 128, 128
      %474 = vsyncadd [#allocation13], %s473
      %s476 = sshll.u32 [#allocation12], 4
      %s477 = int_to_ptr.vmem [resolvable:$true] %s476
      %479 = dma.vmem_to_hbm [thread:$0]  %s477, 128, %s7, [#allocation13]
    $region53: #{tpu_custom_call.1} parent=1 // pred_fallthru
      _
    // Predicated region
    $region54: #{tpu_custom_call.1} parent=1 // pred_check
      _
    $region55: #{tpu_custom_call.1} parent=1 // pred_check_branch
      %481 = sbr.rel (0) target = $region57
    $region56: #{tpu_custom_call.1} parent=1 // pred_region
      %482 = dma.done [#allocation4], 128
    $region57: #{tpu_custom_call.1} parent=1 // pred_fallthru
      _
    // Predicated region
    $region58: #{tpu_custom_call.1} parent=1 // pred_check
      _
    $region59: #{tpu_custom_call.1} parent=1 // pred_check_branch
      %484 = sbr.rel (0) target = $region61
    $region60: #{tpu_custom_call.1} parent=1 // pred_region
      %485 = dma.done [#allocation13], 128
    $region61: #{tpu_custom_call.1} parent=1 // pred_fallthru
      _
    %486 = vsyncpa [#allocation3], 1
    %487 = vsyncpa [#allocation6], 1
    %488 = vsyncpa [#allocation9], 1
    %489 = vsyncpa [#allocation4], 1
    %490 = vsyncpa [#allocation13], 1

</llo_original>
